<compile_context>
chip_gen: v5e
topology: v5e:2x2
jax: 0.10.0
libtpu: 0.0.40
codegen_flags: <defaults>
</compile_context>

<pallas_src>
import jax
import jax.numpy as jnp
from jax import lax
from jax.experimental import pallas as pl
from jax.experimental.pallas import tpu as pltpu

_MXU_DTYPE = jnp.bfloat16


def _gbm_kernel(x_ref, w1_ref, b1_ref, w2_ref, b2_ref, w3_ref, b3_ref, o_ref):
    # x block: (TB, D) f32 straight from HBM; cast to bf16 on the VPU.
    x_bf = x_ref[...].astype(_MXU_DTYPE)                                # (TB, D)

    # Layer 1: contract (4D, D) with (TB, D) on D -> (4D, TB).
    # No explicit transpose is materialized; Mosaic feeds the MXU directly.
    h1 = lax.dot_general(
        w1_ref[...], x_bf,
        dimension_numbers=(((1,), (1,)), ((), ())),
        preferred_element_type=jnp.float32)                             # (4D, TB)
    h1 = jnp.maximum(h1 + b1_ref[...], 0.0)

    # Layer 2: (2D, 4D) @ (4D, TB) -> (2D, TB)
    h2 = jnp.dot(w2_ref[...], h1.astype(_MXU_DTYPE),
                 preferred_element_type=jnp.float32)
    h2 = jnp.maximum(h2 + b2_ref[...], 0.0)

    # Layer 3 + exact sigmoid: (out, 2D) @ (2D, TB) -> (out, TB)
    z = jnp.dot(w3_ref[...], h2.astype(_MXU_DTYPE),
                preferred_element_type=jnp.float32)
    z = z + b3_ref[...]
    o_ref[...] = jax.nn.sigmoid(z).astype(o_ref.dtype)


def _round_up(a, m):
    return pl.cdiv(a, m) * m


def prepare_params(params):
    """One-time prep: fold feature_weights into W1 ((x*fw) @ W1.T == x @ (W1*fw).T),
    cast weights to bf16 for the MXU, reshape biases to broadcastable f32 columns."""
    fw = params["feature_weights"]
    return {
        "W1": (params["W1"] * fw[None, :]).astype(_MXU_DTYPE),   # (4D, D)
        "W2": params["W2"].astype(_MXU_DTYPE),                   # (2D, 4D)
        "W3": params["W3"].astype(_MXU_DTYPE),                   # (out, 2D)
        "b1": params["b1"].reshape(-1, 1).astype(jnp.float32),
        "b2": params["b2"].reshape(-1, 1).astype(jnp.float32),
        "b3": params["b3"].reshape(-1, 1).astype(jnp.float32),
    }


def _choose_batch_tile(B, block_b):
    """Batch tile: multiple of 128 (lane-dense output stores, legal out_spec).
    For large batches, clamp so the grid keeps >=2 steps (v7x has 2 TCs that
    split the 'parallel' batch axis; a 1-step grid would idle one of them)."""
    tb = _round_up(min(block_b, max(B, 1)), 128)
    if B > 1024:
        tb = min(tb, _round_up(pl.cdiv(B, 2), 128))
    return tb


def gradient_boosting_forward(x, prepped, *, block_b=2048):
    """x: [B, D] float32.  prepped: prepare_params(...).  Returns [B, out_dim] f32."""
    B, D = x.shape
    w1, b1 = prepped["W1"], prepped["b1"]
    w2, b2 = prepped["W2"], prepped["b2"]
    w3, b3 = prepped["W3"], prepped["b3"]
    d1, d2 = w1.shape[0], w2.shape[0]
    out_dim = w3.shape[0]

    tb = _choose_batch_tile(B, block_b)
    b_pad = _round_up(B, tb)

    # x stays f32 (kernel casts); pad only when the batch is not tile-aligned.
    x_in = x if b_pad == B else jnp.pad(x, ((0, b_pad - B), (0, 0)))

    const = lambda shape: pl.BlockSpec(shape, lambda i: (0, 0))

    cost = pl.CostEstimate(
        flops=2 * b_pad * (D * d1 + d1 * d2 + d2 * out_dim),
        transcendentals=b_pad * out_dim,
        bytes_accessed=(x_in.size * x_in.dtype.itemsize
                        + sum(int(a.size) * a.dtype.itemsize
                              for a in (w1, b1, w2, b2, w3, b3))
                        + b_pad * out_dim * 4),
    )

    out_t = pl.pallas_call(
        _gbm_kernel,
        out_shape=jax.ShapeDtypeStruct((out_dim, b_pad), jnp.float32),
        grid=(b_pad // tb,),
        in_specs=[
            pl.BlockSpec((tb, D), lambda i: (i, 0)),   # x tile moves with grid
            const(w1.shape), const(b1.shape),          # weights/biases stay resident
            const(w2.shape), const(b2.shape),
            const(w3.shape), const(b3.shape),
        ],
        out_specs=pl.BlockSpec((out_dim, tb), lambda i: (0, i)),
        compiler_params=pltpu.CompilerParams(
            dimension_semantics=("parallel",)),
        cost_estimate=cost,
    )(x_in, w1, b1, w2, b2, w3, b3)

    # (out_dim, B_pad) -> (B, out_dim); transpose/slice of the tiny output.
    return out_t.T[:B]


def init_params(key, input_dim, output_dim=1):
    """Parameters mirroring the PyTorch module: feature_weights = 1/input_dim,
    Linear weights stored [out, in] with U(-1/sqrt(fan_in), 1/sqrt(fan_in))."""
    dims = [(input_dim, 4 * input_dim),
            (4 * input_dim, 2 * input_dim),
            (2 * input_dim, output_dim)]
    params = {"feature_weights": jnp.ones((input_dim,), jnp.float32) / input_dim}
    keys = jax.random.split(key, 2 * len(dims))
    for i, (fan_in, fan_out) in enumerate(dims):
        bound = 1.0 / (fan_in ** 0.5)
        params[f"W{i+1}"] = jax.random.uniform(
            keys[2 * i], (fan_out, fan_in), jnp.float32, -bound, bound)
        params[f"b{i+1}"] = jax.random.uniform(
            keys[2 * i + 1], (fan_out,), jnp.float32, -bound, bound)
    return params


def _ref_f32(x, p):
    h = x * p["feature_weights"]
    h = jnp.maximum(h @ p["W1"].T + p["b1"], 0.0)
    h = jnp.maximum(h @ p["W2"].T + p["b2"], 0.0)
    return jax.nn.sigmoid(h @ p["W3"].T + p["b3"])


def _ref_bf16(x, prepped):
    """Reference matching the kernel's numerics (bf16 MXU inputs, f32 accumulate)."""
    h = jnp.dot(x.astype(_MXU_DTYPE), prepped["W1"].T,
                preferred_element_type=jnp.float32) + prepped["b1"].T
    h = jnp.maximum(h, 0.0)
    h = jnp.dot(h.astype(_MXU_DTYPE), prepped["W2"].T,
                preferred_element_type=jnp.float32) + prepped["b2"].T
    h = jnp.maximum(h, 0.0)
    z = jnp.dot(h.astype(_MXU_DTYPE), prepped["W3"].T,
                preferred_element_type=jnp.float32) + prepped["b3"].T
    return jax.nn.sigmoid(z)


if __name__ == "__main__":
    key = jax.random.PRNGKey(0)
    k_x, k_p, k_x2 = jax.random.split(key, 3)

    B, INPUT_DIM, OUTPUT_DIM = 8, 32, 1
    x = jax.random.normal(k_x, (B, INPUT_DIM), jnp.float32)
    params = init_params(k_p, INPUT_DIM, OUTPUT_DIM)
    prepped = prepare_params(params)

    out = gradient_boosting_forward(x, prepped)
    out = jax.block_until_ready(out)
    assert out.shape == (B, OUTPUT_DIM), out.shape

    # Numerics: tight vs. a kernel-matched bf16 reference, loose vs. pure f32.
    assert jnp.allclose(out, _ref_bf16(x, prepped), atol=1e-2), "bf16-matched mismatch"
    assert jnp.allclose(out, _ref_f32(x, params), atol=5e-2), "f32 reference mismatch"

    # Larger, non-multiple batch: exercises padding + the ragged-tail path.
    B2 = 600
    x2 = jax.random.normal(k_x2, (B2, INPUT_DIM), jnp.float32)
    out2 = jax.block_until_ready(gradient_boosting_forward(x2, prepped))
    assert out2.shape == (B2, OUTPUT_DIM), out2.shape
    assert jnp.allclose(out2, _ref_bf16(x2, prepped), atol=1e-2)

    # Large, tile-aligned batch: no wrapper pad/cast pass, multi-step parallel grid.
    B3 = 4096
    x3 = jax.random.normal(k_x2, (B3, INPUT_DIM), jnp.float32)
    out3 = jax.block_until_ready(gradient_boosting_forward(x3, prepped))
    assert out3.shape == (B3, OUTPUT_DIM), out3.shape
    assert jnp.allclose(out3, _ref_bf16(x3, prepped), atol=1e-2)

    print("KERNEL_OK")
</pallas_src>

<mosaic_0001>
module attributes {stable_mosaic.version = 11 : i64} {
  func.func @_gbm_kernel(%arg0: i32, %arg1: memref<128x32xf32, #tpu.memory_space<vmem>>, %arg2: memref<128x32xbf16, #tpu.memory_space<vmem>>, %arg3: memref<128x1xf32, #tpu.memory_space<vmem>>, %arg4: memref<64x128xbf16, #tpu.memory_space<vmem>>, %arg5: memref<64x1xf32, #tpu.memory_space<vmem>>, %arg6: memref<1x64xbf16, #tpu.memory_space<vmem>>, %arg7: memref<1x1xf32, #tpu.memory_space<vmem>>, %arg8: memref<1x128xf32, #tpu.memory_space<vmem>>) attributes {dimension_semantics = [#tpu.dimension_semantics<parallel>], iteration_bounds = array<i64: 1>, scalar_prefetch = 0 : i64, scratch_operands = 0 : i64, tpu.core_type = #tpu.core_type<tc>, window_params = [{transform_indices = @transform_0, window_bounds = array<i64: 128, 32>}, {pipeline_mode = #tpu.pipeline_mode<synchronous>, transform_indices = @transform_1, window_bounds = array<i64: 128, 32>}, {pipeline_mode = #tpu.pipeline_mode<synchronous>, transform_indices = @transform_2, window_bounds = array<i64: 128, 1>}, {pipeline_mode = #tpu.pipeline_mode<synchronous>, transform_indices = @transform_3, window_bounds = array<i64: 64, 128>}, {pipeline_mode = #tpu.pipeline_mode<synchronous>, transform_indices = @transform_4, window_bounds = array<i64: 64, 1>}, {pipeline_mode = #tpu.pipeline_mode<synchronous>, transform_indices = @transform_5, window_bounds = array<i64: 1, 64>}, {pipeline_mode = #tpu.pipeline_mode<synchronous>, transform_indices = @transform_6, window_bounds = array<i64: 1, 1>}, {transform_indices = @transform_7, window_bounds = array<i64: 1, 128>}]} {
    %c0 = arith.constant 0 : index
    %c0_0 = arith.constant 0 : index
    %0 = vector.load %arg1[%c0, %c0_0] : memref<128x32xf32, #tpu.memory_space<vmem>>, vector<128x32xf32>
    %1 = arith.truncf %0 : vector<128x32xf32> to vector<128x32xbf16>
    %c0_1 = arith.constant 0 : index
    %c0_2 = arith.constant 0 : index
    %2 = vector.load %arg2[%c0_1, %c0_2] : memref<128x32xbf16, #tpu.memory_space<vmem>>, vector<128x32xbf16>
    %cst = arith.constant dense<0.000000e+00> : vector<128x128xf32>
    %3 = tpu.matmul %2, %1, %cst {dimension_numbers = #tpu.dot_dimension_numbers<[1], [1], [0], [0], [0, 0, 1, 0], [], []>} : vector<128x32xbf16>, vector<128x32xbf16>, vector<128x128xf32> -> vector<128x128xf32>
    %c0_3 = arith.constant 0 : index
    %c0_4 = arith.constant 0 : index
    %4 = vector.load %arg3[%c0_3, %c0_4] : memref<128x1xf32, #tpu.memory_space<vmem>>, vector<128x1xf32>
    %5 = vector.broadcast %4 : vector<128x1xf32> to vector<128x128xf32>
    %6 = arith.addf %3, %5 : vector<128x128xf32>
    %cst_5 = arith.constant 0.000000e+00 : f32
    %7 = vector.broadcast %cst_5 : f32 to vector<128x128xf32>
    %8 = arith.maximumf %6, %7 : vector<128x128xf32>
    %c0_6 = arith.constant 0 : index
    %c0_7 = arith.constant 0 : index
    %9 = vector.load %arg4[%c0_6, %c0_7] : memref<64x128xbf16, #tpu.memory_space<vmem>>, vector<64x128xbf16>
    %10 = arith.truncf %8 : vector<128x128xf32> to vector<128x128xbf16>
    %cst_8 = arith.constant dense<0.000000e+00> : vector<64x128xf32>
    %11 = tpu.matmul %9, %10, %cst_8 {dimension_numbers = #tpu.dot_dimension_numbers<[1], [0], [0], [1], [0, 0, 1, 1], [], []>} : vector<64x128xbf16>, vector<128x128xbf16>, vector<64x128xf32> -> vector<64x128xf32>
    %c0_9 = arith.constant 0 : index
    %c0_10 = arith.constant 0 : index
    %12 = vector.load %arg5[%c0_9, %c0_10] : memref<64x1xf32, #tpu.memory_space<vmem>>, vector<64x1xf32>
    %13 = vector.broadcast %12 : vector<64x1xf32> to vector<64x128xf32>
    %14 = arith.addf %11, %13 : vector<64x128xf32>
    %cst_11 = arith.constant 0.000000e+00 : f32
    %15 = vector.broadcast %cst_11 : f32 to vector<64x128xf32>
    %16 = arith.maximumf %14, %15 : vector<64x128xf32>
    %c0_12 = arith.constant 0 : index
    %c0_13 = arith.constant 0 : index
    %17 = vector.load %arg6[%c0_12, %c0_13] : memref<1x64xbf16, #tpu.memory_space<vmem>>, vector<1x64xbf16>
    %18 = arith.truncf %16 : vector<64x128xf32> to vector<64x128xbf16>
    %cst_14 = arith.constant dense<0.000000e+00> : vector<1x128xf32>
    %19 = tpu.matmul %17, %18, %cst_14 {dimension_numbers = #tpu.dot_dimension_numbers<[1], [0], [0], [1], [0, 0, 1, 1], [], []>} : vector<1x64xbf16>, vector<64x128xbf16>, vector<1x128xf32> -> vector<1x128xf32>
    %c0_15 = arith.constant 0 : index
    %c0_16 = arith.constant 0 : index
    %20 = vector.load %arg7[%c0_15, %c0_16] : memref<1x1xf32, #tpu.memory_space<vmem>>, vector<1x1xf32>
    %21 = vector.broadcast %20 : vector<1x1xf32> to vector<1x128xf32>
    %22 = arith.addf %19, %21 : vector<1x128xf32>
    %23 = arith.negf %22 : vector<1x128xf32>
    %24 = math.exp %23 : vector<1x128xf32>
    %cst_17 = arith.constant 1.000000e+00 : f32
    %25 = vector.broadcast %cst_17 : f32 to vector<1x128xf32>
    %26 = arith.addf %25, %24 : vector<1x128xf32>
    %27 = arith.divf %25, %26 : vector<1x128xf32>
    %c0_18 = arith.constant 0 : index
    %c0_19 = arith.constant 0 : index
    %28 = vector.load %arg8[%c0_18, %c0_19] : memref<1x128xf32, #tpu.memory_space<vmem>>, vector<1x128xf32>
    tpu.vector_store %arg8[%c0_18, %c0_19], %27 {strides = array<i32>} : memref<1x128xf32, #tpu.memory_space<vmem>>, vector<1x128xf32>,
    return
  }
  func.func @transform_0(%arg0: i32) -> (i32, i32) {
    %c0_i32 = arith.constant 0 : i32
    %c0_i32_0 = arith.constant 0 : i32
    return %arg0, %c0_i32 : i32, i32
  }
  func.func @transform_1(%arg0: i32) -> (i32, i32) {
    %c0_i32 = arith.constant 0 : i32
    %c0_i32_0 = arith.constant 0 : i32
    %c0_i32_1 = arith.constant 0 : i32
    return %c0_i32, %c0_i32_0 : i32, i32
  }
  func.func @transform_2(%arg0: i32) -> (i32, i32) {
    %c0_i32 = arith.constant 0 : i32
    %c0_i32_0 = arith.constant 0 : i32
    %c0_i32_1 = arith.constant 0 : i32
    return %c0_i32, %c0_i32_0 : i32, i32
  }
  func.func @transform_3(%arg0: i32) -> (i32, i32) {
    %c0_i32 = arith.constant 0 : i32
    %c0_i32_0 = arith.constant 0 : i32
    %c0_i32_1 = arith.constant 0 : i32
    return %c0_i32, %c0_i32_0 : i32, i32
  }
  func.func @transform_4(%arg0: i32) -> (i32, i32) {
    %c0_i32 = arith.constant 0 : i32
    %c0_i32_0 = arith.constant 0 : i32
    %c0_i32_1 = arith.constant 0 : i32
    return %c0_i32, %c0_i32_0 : i32, i32
  }
  func.func @transform_5(%arg0: i32) -> (i32, i32) {
    %c0_i32 = arith.constant 0 : i32
    %c0_i32_0 = arith.constant 0 : i32
    %c0_i32_1 = arith.constant 0 : i32
    return %c0_i32, %c0_i32_0 : i32, i32
  }
  func.func @transform_6(%arg0: i32) -> (i32, i32) {
    %c0_i32 = arith.constant 0 : i32
    %c0_i32_0 = arith.constant 0 : i32
    %c0_i32_1 = arith.constant 0 : i32
    return %c0_i32, %c0_i32_0 : i32, i32
  }
  func.func @transform_7(%arg0: i32) -> (i32, i32) {
    %c0_i32 = arith.constant 0 : i32
    %c0_i32_0 = arith.constant 0 : i32
    return %c0_i32, %arg0 : i32, i32
  }
}

</mosaic_0001>

<llo_original>
// kernel: tpu_custom_call.1
$region0: #{tpu_custom_call.1}
  #allocation0 [shape = 'u32[]', space=smem, size = 0x4, offset = 0x4, fixed_abs, tag = 'smem constant byte address 0x4 - core index']
  #allocation1 [shape = 'u32[72,128]{1,0:T(1,128)}', space=vmem, size = 0x9000, scoped, tag = 'internal scratch']
  #allocation2 [shape = 'f32[1,1]{1,0:T(1,128)S(1)}', space=vmem, size = 0x200, scoped, tag = 'scoped memory for tpu_custom_call.1']
  %s0 = inlined_call_operand.vmem [shape: f32[128,32], index: 0, kind: input, shape index: {}]
  %s1 = inlined_call_operand.vmem [shape: bf16[128,32], index: 1, kind: input, shape index: {}]
  %s2 = inlined_call_operand.vmem [shape: f32[128,1], index: 2, kind: input, shape index: {}]
  %s3 = inlined_call_operand.vmem [shape: bf16[64,128], index: 3, kind: input, shape index: {}]
  %s4 = inlined_call_operand.vmem [shape: f32[64,1], index: 4, kind: input, shape index: {}]
  %s5 = inlined_call_operand.vmem [shape: bf16[1,64], index: 5, kind: input, shape index: {}]
  %s6 = inlined_call_operand.<no memory space> [shape: f32[1,1], index: 6, kind: input, shape index: {}]
  %s7 = inlined_call_operand.hbm [shape: f32[1,128], index: 7, kind: output, shape index: {}]
  %s8 = sld [smem:[#allocation0]]
  $region38: #{tpu_custom_call.1} parent=0
    _
  %s10 = ssub.s32 1, %s8
  %s11 = scalar_select 0, %s10, %s8
  %v12 = vstv %s6
  %13 = vst [vmem:[#allocation2] sm:$0x1] %v12
  $region1: #{tpu_custom_call.1} parent=0
    #allocation3 [shape = 'u8[512]{0}', space=vmem, size = 0x400, scoped, tag = 'output window, operand 0, single buffered']
    #allocation4 [shape = 's32[1]{0}', space=sflag, size = 0x4, scoped, tag = 'scoped memory for tpu_custom_call.1']
    %14 = vsyncpa [#allocation4], 0
    // Predicated region
    $region2: #{tpu_custom_call.1} parent=1 // pred_check
      _
    $region3: #{tpu_custom_call.1} parent=1 // pred_check_branch
      %16 = sbr.rel (0) target = $region5
    $region4: #{tpu_custom_call.1} parent=1 // pred_region
      _
    $region5: #{tpu_custom_call.1} parent=1 // pred_fallthru
      _
    // Predicated region
    $region6: #{tpu_custom_call.1} parent=1 // pred_check
      _
    $region7: #{tpu_custom_call.1} parent=1 // pred_check_branch
      %18 = sbr.rel (0) target = $region9
    $region8: #{tpu_custom_call.1} parent=1 // pred_region
      _
    $region9: #{tpu_custom_call.1} parent=1 // pred_fallthru
      _
    // Predicated region
    $region10: #{tpu_custom_call.1} parent=1 // pred_check
      _
    $region11: #{tpu_custom_call.1} parent=1 // pred_check_branch
      %20 = sbr.rel (0) target = $region13
    $region12: #{tpu_custom_call.1} parent=1 // pred_region
      _
    $region13: #{tpu_custom_call.1} parent=1 // pred_fallthru
      _
    // Predicated region
    $region14: #{tpu_custom_call.1} parent=1 // pred_check
      _
    $region15: #{tpu_custom_call.1} parent=1 // pred_check_branch
      %22 = sbr.rel (0) target = $region17
    $region16: #{tpu_custom_call.1} parent=1 // pred_region
      _
    $region17: #{tpu_custom_call.1} parent=1 // pred_fallthru
      _
    // Predicated region
    $region18: #{tpu_custom_call.1} parent=1 // pred_check
      _
    $region19: #{tpu_custom_call.1} parent=1 // pred_check_branch
      %24 = sbr.rel (0) target = $region21
    $region20: #{tpu_custom_call.1} parent=1 // pred_region
      _
    $region21: #{tpu_custom_call.1} parent=1 // pred_fallthru
      _
    // Predicated region
    $region22: #{tpu_custom_call.1} parent=1 // pred_check
      _
    $region23: #{tpu_custom_call.1} parent=1 // pred_check_branch
      %26 = sbr.rel (0) target = $region25
    $region24: #{tpu_custom_call.1} parent=1 // pred_region
      _
    $region25: #{tpu_custom_call.1} parent=1 // pred_fallthru
      _
    // Predicated region
    $region26: #{tpu_custom_call.1} parent=1 // pred_check
      _
    $region27: #{tpu_custom_call.1} parent=1 // pred_check_branch
      %28 = sbr.rel (0) target = $region29
    $region28: #{tpu_custom_call.1} parent=1 // pred_region
      _
    $region29: #{tpu_custom_call.1} parent=1 // pred_fallthru
      _
    %v30 = vld [vmem:[%s0] sm:$0xff]
    %v31 = vld [vmem:[%s0 + $0x8] sm:$0xff]
    %v32 = vld [vmem:[%s0 + $0x10] sm:$0xff]
    %v33 = vld [vmem:[%s0 + $0x18] sm:$0xff]
    %v34 = vld [vmem:[%s0 + $0x20] sm:$0xff]
    %v35 = vld [vmem:[%s0 + $0x28] sm:$0xff]
    %v36 = vld [vmem:[%s0 + $0x30] sm:$0xff]
    %v37 = vld [vmem:[%s0 + $0x38] sm:$0xff]
    %v38 = vld [vmem:[%s0 + $0x40] sm:$0xff]
    %v39 = vld [vmem:[%s0 + $0x48] sm:$0xff]
    %v40 = vld [vmem:[%s0 + $0x50] sm:$0xff]
    %v41 = vld [vmem:[%s0 + $0x58] sm:$0xff]
    %v42 = vld [vmem:[%s0 + $0x60] sm:$0xff]
    %v43 = vld [vmem:[%s0 + $0x68] sm:$0xff]
    %v44 = vld [vmem:[%s0 + $0x70] sm:$0xff]
    %v45 = vld [vmem:[%s0 + $0x78] sm:$0xff]
    %v46 = vpack.c.bf16 %v31, %v30
    %v47 = vpack.c.bf16 %v33, %v32
    %v48 = vpack.c.bf16 %v35, %v34
    %v49 = vpack.c.bf16 %v37, %v36
    %v50 = vpack.c.bf16 %v39, %v38
    %v51 = vpack.c.bf16 %v41, %v40
    %v52 = vpack.c.bf16 %v43, %v42
    %v53 = vpack.c.bf16 %v45, %v44
    %v54 = vld [vmem:[%s1] sm:$0xf]
    %v55 = vld [vmem:[%s1 + $0x4] sm:$0xf]
    %v56 = vld [vmem:[%s1 + $0x8] sm:$0xf]
    %v57 = vld [vmem:[%s1 + $0xc] sm:$0xf]
    %v58 = vld [vmem:[%s1 + $0x10] sm:$0xf]
    %v59 = vld [vmem:[%s1 + $0x14] sm:$0xf]
    %v60 = vld [vmem:[%s1 + $0x18] sm:$0xf]
    %v61 = vld [vmem:[%s1 + $0x1c] sm:$0xf]
    %v62 = vld [vmem:[%s1 + $0x20] sm:$0xf]
    %v63 = vld [vmem:[%s1 + $0x24] sm:$0xf]
    %v64 = vld [vmem:[%s1 + $0x28] sm:$0xf]
    %v65 = vld [vmem:[%s1 + $0x2c] sm:$0xf]
    %v66 = vld [vmem:[%s1 + $0x30] sm:$0xf]
    %v67 = vld [vmem:[%s1 + $0x34] sm:$0xf]
    %v68 = vld [vmem:[%s1 + $0x38] sm:$0xf]
    %v69 = vld [vmem:[%s1 + $0x3c] sm:$0xf]
    %v70 = vld [vmem:[%s2] sm:$0xff]
    %v71 = vld [vmem:[%s2 + $0x8] sm:$0xff]
    %v72 = vld [vmem:[%s2 + $0x10] sm:$0xff]
    %v73 = vld [vmem:[%s2 + $0x18] sm:$0xff]
    %v74 = vld [vmem:[%s2 + $0x20] sm:$0xff]
    %v75 = vld [vmem:[%s2 + $0x28] sm:$0xff]
    %v76 = vld [vmem:[%s2 + $0x30] sm:$0xff]
    %v77 = vld [vmem:[%s2 + $0x38] sm:$0xff]
    %v78 = vld [vmem:[%s2 + $0x40] sm:$0xff]
    %v79 = vld [vmem:[%s2 + $0x48] sm:$0xff]
    %v80 = vld [vmem:[%s2 + $0x50] sm:$0xff]
    %v81 = vld [vmem:[%s2 + $0x58] sm:$0xff]
    %v82 = vld [vmem:[%s2 + $0x60] sm:$0xff]
    %v83 = vld [vmem:[%s2 + $0x68] sm:$0xff]
    %v84 = vld [vmem:[%s2 + $0x70] sm:$0xff]
    %v85 = vld [vmem:[%s2 + $0x78] sm:$0xff]
    %87 = vset.pattern.permute.xlu0 0
    %88 = vperm.xlu0 %87, %v70
    %v89 = vpop.permute.xlu0 %88
    %92 = vset.pattern.permute.xlu0 0
    %93 = vperm.xlu0 %92, %v71
    %v94 = vpop.permute.xlu0 %93
    %97 = vset.pattern.permute.xlu0 0
    %98 = vperm.xlu0 %97, %v72
    %v99 = vpop.permute.xlu0 %98
    %102 = vset.pattern.permute.xlu0 0
    %103 = vperm.xlu0 %102, %v73
    %v104 = vpop.permute.xlu0 %103
    %107 = vset.pattern.permute.xlu0 0
    %108 = vperm.xlu0 %107, %v74
    %v109 = vpop.permute.xlu0 %108
    %112 = vset.pattern.permute.xlu0 0
    %113 = vperm.xlu0 %112, %v75
    %v114 = vpop.permute.xlu0 %113
    %117 = vset.pattern.permute.xlu0 0
    %118 = vperm.xlu0 %117, %v76
    %v119 = vpop.permute.xlu0 %118
    %122 = vset.pattern.permute.xlu0 0
    %123 = vperm.xlu0 %122, %v77
    %v124 = vpop.permute.xlu0 %123
    %127 = vset.pattern.permute.xlu0 0
    %128 = vperm.xlu0 %127, %v78
    %v129 = vpop.permute.xlu0 %128
    %132 = vset.pattern.permute.xlu0 0
    %133 = vperm.xlu0 %132, %v79
    %v134 = vpop.permute.xlu0 %133
    %137 = vset.pattern.permute.xlu0 0
    %138 = vperm.xlu0 %137, %v80
    %v139 = vpop.permute.xlu0 %138
    %142 = vset.pattern.permute.xlu0 0
    %143 = vperm.xlu0 %142, %v81
    %v144 = vpop.permute.xlu0 %143
    %147 = vset.pattern.permute.xlu0 0
    %148 = vperm.xlu0 %147, %v82
    %v149 = vpop.permute.xlu0 %148
    %152 = vset.pattern.permute.xlu0 0
    %153 = vperm.xlu0 %152, %v83
    %v154 = vpop.permute.xlu0 %153
    %157 = vset.pattern.permute.xlu0 0
    %158 = vperm.xlu0 %157, %v84
    %v159 = vpop.permute.xlu0 %158
    %162 = vset.pattern.permute.xlu0 0
    %163 = vperm.xlu0 %162, %v85
    %v164 = vpop.permute.xlu0 %163
    %v182 = vunpack.c.l.b16 %v54
    %v183 = vunpack.c.l.b16 %v55
    %v184 = vunpack.c.l.b16 %v56
    %v185 = vunpack.c.l.b16 %v57
    %v186 = vunpack.c.l.b16 %v58
    %v187 = vunpack.c.l.b16 %v59
    %v188 = vunpack.c.l.b16 %v60
    %v189 = vunpack.c.l.b16 %v61
    %v190 = vunpack.c.l.b16 %v62
    %v191 = vunpack.c.l.b16 %v63
    %v192 = vunpack.c.l.b16 %v64
    %v193 = vunpack.c.l.b16 %v65
    %v194 = vunpack.c.l.b16 %v66
    %v195 = vunpack.c.l.b16 %v67
    %v196 = vunpack.c.l.b16 %v68
    %v197 = vunpack.c.l.b16 %v69
    %v198 = vpack.c.b16 %v183, %v182
    %v199 = vpack.c.b16 %v185, %v184
    %v200 = vpack.c.b16 %v187, %v186
    %v201 = vpack.c.b16 %v189, %v188
    %v202 = vpack.c.b16 %v191, %v190
    %v203 = vpack.c.b16 %v193, %v192
    %v204 = vpack.c.b16 %v195, %v194
    %v205 = vpack.c.b16 %v197, %v196
    %vm206 = vcmask 261120
    %v208 = vsel %vm206, %v198, 0
    %v211 = vsel %vm206, %v199, 0
    %v214 = vsel %vm206, %v200, 0
    %v217 = vsel %vm206, %v201, 0
    %v220 = vsel %vm206, %v202, 0
    %v223 = vsel %vm206, %v203, 0
    %v226 = vsel %vm206, %v204, 0
    %v229 = vsel %vm206, %v205, 0
    %v232 = vsel %vm206, %v46, 0
    %v235 = vsel %vm206, %v47, 0
    %v238 = vsel %vm206, %v48, 0
    %v241 = vsel %vm206, %v49, 0
    %v244 = vsel %vm206, %v50, 0
    %v247 = vsel %vm206, %v51, 0
    %v250 = vsel %vm206, %v52, 0
    %v253 = vsel %vm206, %v53, 0
    %255 = vmatpush.bf16.xpose.msra.mxu0 %v253
    %256 = vmatpush.bf16.xpose.msra.mxu0 %v250
    %257 = vmatpush.bf16.xpose.msra.mxu0 %v247
    %258 = vmatpush.bf16.xpose.msra.mxu0 %v244
    %259 = vmatpush.bf16.xpose.msra.mxu0 %v241
    %260 = vmatpush.bf16.xpose.msra.mxu0 %v238
    %261 = vmatpush.bf16.xpose.msra.mxu0 %v235
    %262 = vmatpush.bf16.xpose.msra.mxu0 %v232
    %263 = vmatmul.bf16.gmra.mxu0 %v208
    %v264 = vpop.f32.mrf.mxu0
    %v265 = vadd.f32 %v89, %v264
    %v266 = vpop.f32.mrf.mxu0
    %v267 = vadd.f32 %v94, %v266
    %268 = vmatmul.bf16.gmra.mxu0 %v211
    %v269 = vpop.f32.mrf.mxu0
    %v270 = vadd.f32 %v99, %v269
    %v271 = vpop.f32.mrf.mxu0
    %v272 = vadd.f32 %v104, %v271
    %273 = vmatmul.bf16.gmra.mxu0 %v214
    %v274 = vpop.f32.mrf.mxu0
    %v275 = vadd.f32 %v109, %v274
    %v276 = vpop.f32.mrf.mxu0
    %v277 = vadd.f32 %v114, %v276
    %278 = vmatmul.bf16.gmra.mxu0 %v217
    %v279 = vpop.f32.mrf.mxu0
    %v280 = vadd.f32 %v119, %v279
    %v281 = vpop.f32.mrf.mxu0
    %v282 = vadd.f32 %v124, %v281
    %283 = vmatmul.bf16.gmra.mxu0 %v220
    %v284 = vpop.f32.mrf.mxu0
    %v285 = vadd.f32 %v129, %v284
    %v286 = vpop.f32.mrf.mxu0
    %v287 = vadd.f32 %v134, %v286
    %288 = vmatmul.bf16.gmra.mxu0 %v223
    %v289 = vpop.f32.mrf.mxu0
    %v290 = vadd.f32 %v139, %v289
    %v291 = vpop.f32.mrf.mxu0
    %v292 = vadd.f32 %v144, %v291
    %293 = vmatmul.bf16.gmra.mxu0 %v226
    %v294 = vpop.f32.mrf.mxu0
    %v295 = vadd.f32 %v149, %v294
    %v296 = vpop.f32.mrf.mxu0
    %v297 = vadd.f32 %v154, %v296
    %298 = vmatmul.bf16.gmra.mxu0 %v229
    %v299 = vpop.f32.mrf.mxu0
    %v300 = vadd.f32 %v159, %v299
    %v301 = vpop.f32.mrf.mxu0
    %v302 = vadd.f32 %v164, %v301
    %303 = vdwg.mxu0
    %v304 = vmax.f32 %v265, 0.0
    %v305 = vmax.f32 %v267, 0.0
    %v306 = vmax.f32 %v270, 0.0
    %v307 = vmax.f32 %v272, 0.0
    %v308 = vmax.f32 %v275, 0.0
    %v309 = vmax.f32 %v277, 0.0
    %v310 = vmax.f32 %v280, 0.0
    %v311 = vmax.f32 %v282, 0.0
    %v312 = vmax.f32 %v285, 0.0
    %v313 = vmax.f32 %v287, 0.0
    %v314 = vmax.f32 %v290, 0.0
    %v315 = vmax.f32 %v292, 0.0
    %v316 = vmax.f32 %v295, 0.0
    %v317 = vmax.f32 %v297, 0.0
    %v318 = vmax.f32 %v300, 0.0
    %v319 = vmax.f32 %v302, 0.0
    %v320 = vld [vmem:[%s3] sm:$0xf]
    %v321 = vld [vmem:[%s3 + $0x4] sm:$0xf]
    %v322 = vld [vmem:[%s3 + $0x8] sm:$0xf]
    %v323 = vld [vmem:[%s3 + $0xc] sm:$0xf]
    %v324 = vld [vmem:[%s3 + $0x10] sm:$0xf]
    %v325 = vld [vmem:[%s3 + $0x14] sm:$0xf]
    %v326 = vld [vmem:[%s3 + $0x18] sm:$0xf]
    %v327 = vld [vmem:[%s3 + $0x1c] sm:$0xf]
    %v328 = vpack.c.bf16 %v305, %v304
    %v329 = vpack.c.bf16 %v307, %v306
    %v330 = vpack.c.bf16 %v309, %v308
    %v331 = vpack.c.bf16 %v311, %v310
    %v332 = vpack.c.bf16 %v313, %v312
    %v333 = vpack.c.bf16 %v315, %v314
    %v334 = vpack.c.bf16 %v317, %v316
    %v335 = vpack.c.bf16 %v319, %v318
    %v336 = vld [vmem:[%s4] sm:$0xff]
    %v337 = vld [vmem:[%s4 + $0x8] sm:$0xff]
    %v338 = vld [vmem:[%s4 + $0x10] sm:$0xff]
    %v339 = vld [vmem:[%s4 + $0x18] sm:$0xff]
    %v340 = vld [vmem:[%s4 + $0x20] sm:$0xff]
    %v341 = vld [vmem:[%s4 + $0x28] sm:$0xff]
    %v342 = vld [vmem:[%s4 + $0x30] sm:$0xff]
    %v343 = vld [vmem:[%s4 + $0x38] sm:$0xff]
    %345 = vset.pattern.permute.xlu0 0
    %346 = vperm.xlu0 %345, %v336
    %v347 = vpop.permute.xlu0 %346
    %350 = vset.pattern.permute.xlu0 0
    %351 = vperm.xlu0 %350, %v337
    %v352 = vpop.permute.xlu0 %351
    %355 = vset.pattern.permute.xlu0 0
    %356 = vperm.xlu0 %355, %v338
    %v357 = vpop.permute.xlu0 %356
    %360 = vset.pattern.permute.xlu0 0
    %361 = vperm.xlu0 %360, %v339
    %v362 = vpop.permute.xlu0 %361
    %365 = vset.pattern.permute.xlu0 0
    %366 = vperm.xlu0 %365, %v340
    %v367 = vpop.permute.xlu0 %366
    %370 = vset.pattern.permute.xlu0 0
    %371 = vperm.xlu0 %370, %v341
    %v372 = vpop.permute.xlu0 %371
    %375 = vset.pattern.permute.xlu0 0
    %376 = vperm.xlu0 %375, %v342
    %v377 = vpop.permute.xlu0 %376
    %380 = vset.pattern.permute.xlu0 0
    %381 = vperm.xlu0 %380, %v343
    %v382 = vpop.permute.xlu0 %381
    %v392 = vunpack.c.l.b16 %v320
    %v393 = vunpack.c.l.b16 %v321
    %v394 = vunpack.c.l.b16 %v322
    %v395 = vunpack.c.l.b16 %v323
    %v396 = vunpack.c.l.b16 %v324
    %v397 = vunpack.c.l.b16 %v325
    %v398 = vunpack.c.l.b16 %v326
    %v399 = vunpack.c.l.b16 %v327
    %v400 = vpack.c.b16 %v393, %v392
    %v401 = vpack.c.b16 %v395, %v394
    %v402 = vpack.c.b16 %v397, %v396
    %v403 = vpack.c.b16 %v399, %v398
    %408 = vmatpush.bf16.msra.mxu0 %v335
    %409 = vmatpush.bf16.msra.mxu0 %v334
    %410 = vmatpush.bf16.msra.mxu0 %v333
    %411 = vmatpush.bf16.msra.mxu0 %v332
    %412 = vmatpush.bf16.msra.mxu0 %v331
    %413 = vmatpush.bf16.msra.mxu0 %v330
    %414 = vmatpush.bf16.msra.mxu0 %v329
    %415 = vmatpush.bf16.msra.mxu0 %v328
    %416 = vmatmul.bf16.gmra.mxu0 %v400
    %v417 = vpop.f32.mrf.mxu0
    %v418 = vadd.f32 %v347, %v417
    %v419 = vpop.f32.mrf.mxu0
    %v420 = vadd.f32 %v352, %v419
    %421 = vmatmul.bf16.gmra.mxu0 %v401
    %v422 = vpop.f32.mrf.mxu0
    %v423 = vadd.f32 %v357, %v422
    %v424 = vpop.f32.mrf.mxu0
    %v425 = vadd.f32 %v362, %v424
    %426 = vmatmul.bf16.gmra.mxu0 %v402
    %v427 = vpop.f32.mrf.mxu0
    %v428 = vadd.f32 %v367, %v427
    %v429 = vpop.f32.mrf.mxu0
    %v430 = vadd.f32 %v372, %v429
    %431 = vmatmul.bf16.gmra.mxu0 %v403
    %v432 = vpop.f32.mrf.mxu0
    %v433 = vadd.f32 %v377, %v432
    %v434 = vpop.f32.mrf.mxu0
    %v435 = vadd.f32 %v382, %v434
    %436 = vdwg.mxu0
    %v437 = vmax.f32 %v418, 0.0
    %v438 = vmax.f32 %v420, 0.0
    %v439 = vmax.f32 %v423, 0.0
    %v440 = vmax.f32 %v425, 0.0
    %v441 = vmax.f32 %v428, 0.0
    %v442 = vmax.f32 %v430, 0.0
    %v443 = vmax.f32 %v433, 0.0
    %v444 = vmax.f32 %v435, 0.0
    %v445 = vld [vmem:[%s5] sm:$0x1]
    %v446 = vpack.c.bf16 %v438, %v437
    %v447 = vpack.c.bf16 %v440, %v439
    %v448 = vpack.c.bf16 %v442, %v441
    %v449 = vpack.c.bf16 %v444, %v443
    %v450 = vld [vmem:[#allocation2] sm:$0x1]
    %452 = vset.pattern.permute.xlu0 0
    %453 = vperm.xlu0 %452, %v450
    %v454 = vpop.permute.xlu0 %453
    %v456 = vperm.slane %v454, 0
    %vm457 = vcmask 523264
    %v459 = vsel %vm457, %v445, 0
    %461 = vmatpush.bf16.msra.mxu0 0
    %462 = vmatpush.bf16.msra.mxu0 0
    %463 = vmatpush.bf16.msra.mxu0 0
    %464 = vmatpush.bf16.msra.mxu0 0
    %465 = vmatpush.bf16.msra.mxu0 %v449
    %466 = vmatpush.bf16.msra.mxu0 %v448
    %467 = vmatpush.bf16.msra.mxu0 %v447
    %468 = vmatpush.bf16.msra.mxu0 %v446
    %469 = vmatmul.bf16.gmra.mxu0 %v459
    %v470 = vpop.f32.mrf.mxu0
    %v471 = vadd.f32 %v456, %v470
    %v472 = vpop.f32.mrf.mxu0
    %473 = vdwg.mxu0
    %v474 = vxor.u32 %v471, 2147483648
    %v475 = vmul.f32 %v474, 1.442695
    %v476 = vpow.pop %v475
    %v477 = vadd.f32 %v476, 1.0
    %v478 = vrcp.pop %v477
    %v479 = vmul.f32 %v477, %v478
    %v480 = vsub.f32 1.0, %v479
    %v481 = vmul.f32 %v478, %v480
    %v482 = vadd.f32 %v478, %v481
    %vm483 = vweird.f32 %v477
    %vm484 = vweird.f32 %v478
    %vm485 = vmor %vm483, %vm484
    %v486 = vsel %vm485, %v478, %v482
    %v487 = vand.u32 2147483647, %v477
    %vm488 = vcmp.eq.f32.partialorder %v487, 8.507059e+37
    %v489 = vand.u32 %v477, 2147483648
    %v490 = vor.u32 1.1754944e-38, %v489
    %v491 = vsel %vm488, %v490, %v486
    %v492 = vmul.f32 1.0, %v491
    %493 = vst [vmem:[#allocation3] sm:$0x1] %v492
    // Predicated region
    $region30: #{tpu_custom_call.1} parent=1 // pred_check
      _
    $region31: #{tpu_custom_call.1} parent=1 // pred_check_branch
      %495 = sbr.rel (0) target = $region33
    $region32: #{tpu_custom_call.1} parent=1 // pred_region
      %497 = vsyncadd [#allocation4], 0
      %s499 = sshll.u32 [#allocation3], 4
      %s500 = int_to_ptr.vmem [resolvable:$true] %s499
      %s501 = sshll.u32 %s7, 4
      %s502 = int_to_ptr.hbm [resolvable:$true] %s501
      %504 = dma.vmem_to_hbm [thread:$0]  %s500, 16, %s502, [#allocation4]
    $region33: #{tpu_custom_call.1} parent=1 // pred_fallthru
      _
    // Predicated region
    $region34: #{tpu_custom_call.1} parent=1 // pred_check
      _
    $region35: #{tpu_custom_call.1} parent=1 // pred_check_branch
      %506 = sbr.rel (0) target = $region37
    $region36: #{tpu_custom_call.1} parent=1 // pred_region
      %508 = dma.done [#allocation4], 16
    $region37: #{tpu_custom_call.1} parent=1 // pred_fallthru
      _
    %509 = vsyncpa [#allocation4], 1

</llo_original>
